<compile_context>
chip_gen: v7x
topology: tpu7x:2x2x1
jax: 0.10.0
libtpu: 0.0.40
codegen_flags: <defaults>
</compile_context>

<pallas_src>
import math

import jax
import jax.numpy as jnp
from jax.experimental import pallas as pl
from jax.experimental.pallas import tpu as pltpu


# ----------------------------------------------------------------------------
# Pallas kernel: tiled (C, HW) x (HW, HW) matmul, accumulating in the resident
# f32 output block (no scratch accumulator).
# ----------------------------------------------------------------------------
def _warp_kernel(img_ref, wt_ref, out_ref):
    """One (batch, N-tile, K-tile) grid step.

    img_ref: (C, HWp)  whole flattened image slab (bf16 raw / f32 labels),
                       block index constant over (n, k) -> DMAed once per batch.
    wt_ref : (tk, tn)  bf16 K x N tile of the composed, pre-transposed matrix.
    out_ref: (C, tn)   f32 output N-slab; K-invariant block index -> VMEM
                       resident across the K axis, doubles as the accumulator.
    """
    k = pl.program_id(2)

    @pl.when(k == 0)
    def _():
        out_ref[...] = jnp.zeros_like(out_ref)

    tk = wt_ref.shape[0]
    start = pl.multiple_of(k * tk, tk)
    img_k = img_ref[:, pl.ds(start, tk)]
    out_ref[...] += jnp.dot(img_k, wt_ref[...],
                            preferred_element_type=jnp.float32)


def _round_up(x, m):
    return ((x + m - 1) // m) * m


def _pick_tile(hw, cap):
    """Largest (8,128)-friendly tile <= cap that divides hw (hw is a x128)."""
    for t in (2048, 1024, 512, 256, 128):
        if t <= cap and hw % t == 0:
            return t
    return 128


def warp_pipeline(img_nchw, wt, *, img_dtype=jnp.bfloat16, out_dtype=jnp.float32):
    """img_nchw: (B, C, H, W); wt: (B, HW, HW) composed pre-transposed matrix."""
    B, C, H, W = img_nchw.shape
    HW = H * W
    assert wt.shape == (B, HW, HW)

    # Pad HW to a lane-friendly multiple of 128 (extra input columns are zero and
    # multiply against zero wt rows; extra output columns are cropped).
    HWp = _round_up(HW, 128)
    img_flat = img_nchw.reshape(B, C, HW).astype(img_dtype)
    wt = wt.astype(jnp.bfloat16)
    if HWp != HW:
        img_flat = jnp.pad(img_flat, ((0, 0), (0, 0), (0, HWp - HW)))
        wt = jnp.pad(wt, ((0, 0), (0, HWp - HW), (0, HWp - HW)))

    # Big tiles to amortize the ~0.35us per-grid-step overhead; keep at least two
    # parallel (B x N) units alive when B == 1 so v7x's dual TensorCores both work.
    tn_cap = 2048
    if B == 1:
        tn_cap = min(tn_cap, max(128, HWp // 2))
    tn = _pick_tile(HWp, tn_cap)
    tk = _pick_tile(HWp, 1024)
    grid = (B, HWp // tn, HWp // tk)   # reduction (K) axis innermost

    # Actual VMEM requirement (double-buffered image slab + wt tile + out tile)
    # plus ~30% headroom, capped at 40 MiB (v7x physical VMEM is only 64 MiB).
    img_bytes = jnp.dtype(img_dtype).itemsize
    req = (2 * C * HWp * img_bytes
           + 2 * tk * tn * 2
           + 2 * C * tn * 4)
    vmem_limit = int(min(40 << 20, max(16 << 20, int(req * 1.3))))

    # TODO(synk): sweep pipeline_mode=pl.Buffered(3) on the wt BlockSpec; and on
    # v5e/v6e an int8 (v7x: fp8) nearest-mode matrix would halve MXU weight-ingest.
    out = pl.pallas_call(
        _warp_kernel,
        out_shape=jax.ShapeDtypeStruct((B, C, HWp), jnp.float32),
        grid_spec=pltpu.PrefetchScalarGridSpec(
            num_scalar_prefetch=0,
            grid=grid,
            in_specs=[
                # whole image slab resident per batch (block index constant over n, k)
                pl.BlockSpec((None, C, HWp), lambda b, n, k: (b, 0, 0)),
                pl.BlockSpec((None, tk, tn), lambda b, n, k: (b, k, n)),
            ],
            out_specs=pl.BlockSpec((None, C, tn), lambda b, n, k: (b, 0, n)),
        ),
        compiler_params=pltpu.CompilerParams(
            dimension_semantics=("parallel", "parallel", "arbitrary"),
            vmem_limit_bytes=vmem_limit,
        ),
    )(img_flat, wt)

    out = out[:, :, :HW].reshape(B, C, H, W)
    return out.astype(out_dtype)


# ----------------------------------------------------------------------------
# Glue: build per-augmentation sampling matrices (plain JAX, one-hot, no scatter).
# ----------------------------------------------------------------------------
def _sampling_matrix(src_x, src_y, H, W, bilinear):
    """M[p, q] = weight of input flat pixel q for output flat pixel p (zeros padding)."""
    HW = H * W
    if bilinear:
        x0f = jnp.floor(src_x)
        y0f = jnp.floor(src_y)
        wx = src_x - x0f
        wy = src_y - y0f
        x0 = x0f.astype(jnp.int32)
        y0 = y0f.astype(jnp.int32)
        taps = [
            (y0, x0, (1 - wy) * (1 - wx)),
            (y0, x0 + 1, (1 - wy) * wx),
            (y0 + 1, x0, wy * (1 - wx)),
            (y0 + 1, x0 + 1, wy * wx),
        ]
    else:
        # TODO(synk): jnp.round is round-half-to-even; torch grid_sample nearest may
        # differ by one pixel exactly at .5 source coordinates.
        xn = jnp.round(src_x).astype(jnp.int32)
        yn = jnp.round(src_y).astype(jnp.int32)
        taps = [(yn, xn, jnp.ones((HW,), jnp.float32))]

    cols = jnp.arange(HW)
    Wm = jnp.zeros((HW, HW), jnp.float32)
    for yy, xx, ww in taps:
        valid = (yy >= 0) & (yy < H) & (xx >= 0) & (xx < W)
        q = jnp.clip(yy, 0, H - 1) * W + jnp.clip(xx, 0, W - 1)
        w = jnp.where(valid, ww, 0.0)
        Wm = Wm + w[:, None] * (q[:, None] == cols[None, :]).astype(jnp.float32)
    return Wm


# ----------------------------------------------------------------------------
# Synthetic stand-ins for kornia augmentations (deterministic param sampling).
# ----------------------------------------------------------------------------
class RandomHorizontalFlip:
    flags = {}                      # no 'interpolation' flag -> exact permutation
    interpolating = False

    def __init__(self, p=1.0):
        self.p = p

    def sample_params(self, key, batch):
        # TODO(synk): kornia samples Bernoulli(p) at runtime; here deterministic.
        return jnp.full((batch,), self.p >= 0.5)

    def sampling_coords(self, flip, H, W):
        ys, xs = jnp.meshgrid(jnp.arange(H, dtype=jnp.float32),
                              jnp.arange(W, dtype=jnp.float32), indexing="ij")
        src_x = jnp.where(flip, (W - 1) - xs, xs)
        src_y = ys
        return src_x.reshape(-1), src_y.reshape(-1)


class RandomRotation:
    flags = {"interpolation": None}  # has 'interpolation' -> bilinear/nearest per tensor
    interpolating = True

    def __init__(self, degrees=30.0):
        self.degrees = degrees

    def sample_params(self, key, batch):
        deg = jax.random.uniform(key, (batch,), minval=-self.degrees, maxval=self.degrees)
        return deg * math.pi / 180.0

    def sampling_coords(self, theta, H, W):
        ys, xs = jnp.meshgrid(jnp.arange(H, dtype=jnp.float32),
                              jnp.arange(W, dtype=jnp.float32), indexing="ij")
        cx, cy = (W - 1) / 2.0, (H - 1) / 2.0
        x = xs - cx
        y = ys - cy
        c, s = jnp.cos(theta), jnp.sin(theta)
        # inverse mapping: sample input at R(-theta) @ (dst - center) + center
        src_x = c * x + s * y + cx
        src_y = -s * x + c * y + cy
        return src_x.reshape(-1), src_y.reshape(-1)


# ----------------------------------------------------------------------------
# The pipeline (mirrors torch_em.transform.augmentation.KorniaAugmentationPipeline).
# ----------------------------------------------------------------------------
class KorniaAugmentationPipeline:
    interpolatable_dtypes = (jnp.float16, jnp.bfloat16, jnp.float32, jnp.float64)

    def __init__(self, *kornia_augmentations, dtype=jnp.float32):
        self.augmentations = list(kornia_augmentations)
        self.dtype = dtype
        self.halo = self.compute_halo()

    def compute_halo(self):
        halo = None
        for aug in self.augmentations:
            if isinstance(aug, RandomRotation):
                halo = [32, 32]
        return halo

    def is_interpolatable(self, tensor):
        return tensor.dtype in self.interpolatable_dtypes

    def __call__(self, key, *tensors):
        # interpolation mode decided from the ORIGINAL dtypes (as in torch module)
        interpolatable = [self.is_interpolatable(t) for t in tensors]
        # ensure_tensor(tensor, self.dtype)
        tensors = [jnp.asarray(t, dtype=self.dtype) for t in tensors]

        if not self.augmentations:
            return list(tensors)

        B, _, H, W = tensors[0].shape

        # sample params once (from the first tensor's batch) and reuse for all tensors
        keys = jax.random.split(key, len(self.augmentations))
        per_aug_params = [aug.sample_params(k, B)
                          for aug, k in zip(self.augmentations, keys)]

        # Build only the interpolation modes some tensor actually needs.
        need_bilinear = any(interpolatable)
        need_nearest = not all(interpolatable)
        modes = [m for m, needed in ((True, need_bilinear), (False, need_nearest)) if needed]

        def build_aug_matrix(aug, params, bilinear):
            def one(p):
                sx, sy = aug.sampling_coords(p, H, W)
                return _sampling_matrix(sx, sy, H, W, bilinear)
            return jax.vmap(one)(params)                  # (B, HW, HW)

        # Per-aug matrices; non-interpolating augs (e.g. flip) are mode-independent,
        # so build them once and share across modes.
        per_aug_mats = []
        for aug, params in zip(self.augmentations, per_aug_params):
            if aug.interpolating:
                mats = {m: build_aug_matrix(aug, params, m) for m in modes}
            else:
                shared = build_aug_matrix(aug, params, False)
                mats = {m: shared for m in modes}
            per_aug_mats.append(mats)

        # Compose all augmentations into ONE pre-transposed matrix per mode:
        # sequential resampling  cur <- cur @ M_a^T  ==  cur @ (M_1^T @ ... @ M_A^T).
        # Composition runs in bf16 operands / f32 accumulation (half the HBM bytes of
        # the previous f32 compose; the 0/1 nearest matrices stay exact).
        # TODO(synk): each per-aug matrix has <=4 non-zeros per row; a gather-based
        # composition would cut the remaining O(B*HW^3) wrapper cost entirely.
        wt_by_mode = {}
        for m in modes:
            wt = jnp.swapaxes(per_aug_mats[0][m], -1, -2).astype(jnp.bfloat16)
            for mats in per_aug_mats[1:]:
                nxt = jnp.swapaxes(mats[m], -1, -2).astype(jnp.bfloat16)
                wt = jnp.einsum("bij,bjk->bik", wt, nxt,
                                preferred_element_type=jnp.float32).astype(jnp.bfloat16)
            wt_by_mode[m] = wt

        # Fuse all tensors sharing an interpolation mode into a single pallas_call
        # (concat along channels) so the composed matrix is DMAed only once per mode.
        # Bilinear (raw) activations go in bf16; nearest (label) activations stay f32
        # so integer IDs > 256 are preserved exactly.
        outputs = [None] * len(tensors)
        for m in modes:
            idxs = [i for i, interp in enumerate(interpolatable) if interp == m]
            cat = jnp.concatenate([tensors[i] for i in idxs], axis=1)
            img_dtype = jnp.bfloat16 if m else jnp.float32
            warped = warp_pipeline(cat, wt_by_mode[m],
                                   img_dtype=img_dtype, out_dtype=self.dtype)
            offsets, off = [], 0
            for i in idxs[:-1]:
                off += tensors[i].shape[1]
                offsets.append(off)
            parts = jnp.split(warped, offsets, axis=1) if offsets else [warped]
            for i, part in zip(idxs, parts):
                outputs[i] = part
        return outputs


if __name__ == "__main__":
    key = jax.random.PRNGKey(0)
    k_img, k_lbl, k_aug = jax.random.split(key, 3)

    # raw data (float -> interpolatable -> bilinear) and labels (int -> nearest)
    raw = jax.random.normal(k_img, (2, 4, 16, 16), dtype=jnp.float32)
    label = jax.random.randint(k_lbl, (2, 1, 16, 16), 0, 5, dtype=jnp.int32)

    # Correctness sanity: flip-only pipeline is an exact permutation.
    flip_only = KorniaAugmentationPipeline(RandomHorizontalFlip(p=1.0), dtype=jnp.float32)
    f_raw, f_lbl = flip_only(k_aug, raw, label)
    jax.block_until_ready(f_raw)
    assert jnp.allclose(f_raw, jnp.flip(raw, axis=-1), atol=3e-2, rtol=1e-2)   # bf16 raw cast
    # label path is f32 end-to-end -> exact
    assert jnp.max(jnp.abs(f_lbl - jnp.flip(label, axis=-1).astype(jnp.float32))) < 1e-6

    pipeline = KorniaAugmentationPipeline(
        RandomHorizontalFlip(p=1.0), RandomRotation(degrees=30.0),
        dtype=jnp.float32,
    )
    outs = pipeline(k_aug, raw, label)
    for o in outs:
        jax.block_until_ready(o)

    assert outs[0].shape == raw.shape and outs[0].dtype == jnp.float32
    assert outs[1].shape == label.shape and outs[1].dtype == jnp.float32
    assert bool(jnp.all(jnp.isfinite(outs[0]))) and bool(jnp.all(jnp.isfinite(outs[1])))
    assert pipeline.halo == [32, 32]
    print("KERNEL_OK")
</pallas_src>

<mosaic_0001>
module attributes {stable_mosaic.version = 11 : i64} {
  func.func @_warp_kernel(%arg0: i32, %arg1: i32, %arg2: i32, %arg3: memref<1x4x256xbf16, #tpu.memory_space<vmem>>, %arg4: memref<1x256x256xbf16, #tpu.memory_space<vmem>>, %arg5: memref<1x4x256xf32, #tpu.memory_space<vmem>>) attributes {dimension_semantics = [#tpu.dimension_semantics<parallel>, #tpu.dimension_semantics<parallel>, #tpu.dimension_semantics<arbitrary>], iteration_bounds = array<i64: 2, 1, 1>, scalar_prefetch = 0 : i64, scratch_operands = 0 : i64, tpu.core_type = #tpu.core_type<tc>, window_params = [{transform_indices = @transform_0, window_bounds = array<i64: 1, 4, 256>}, {transform_indices = @transform_1, window_bounds = array<i64: 1, 256, 256>}, {transform_indices = @transform_2, window_bounds = array<i64: 1, 4, 256>}]} {
    %c0_i32 = arith.constant 0 : i32
    %0 = arith.cmpi eq, %arg2, %c0_i32 : i32
    %1 = arith.extui %0 : i1 to i32
    %c0_i32_0 = arith.constant 0 : i32
    %2 = arith.cmpi ne, %1, %c0_i32_0 : i32
    scf.if %2 {
      %cst_11 = arith.constant 0.000000e+00 : f32
      %17 = vector.broadcast %cst_11 : f32 to vector<4x256xf32>
      %c0_12 = arith.constant 0 : index
      %c0_13 = arith.constant 0 : index
      %c0_14 = arith.constant 0 : index
      %18 = vector.load %arg5[%c0_12, %c0_13, %c0_14] : memref<1x4x256xf32, #tpu.memory_space<vmem>>, vector<1x4x256xf32>
      %19 = vector.shape_cast %18 : vector<1x4x256xf32> to vector<4x256xf32>
      %20 = vector.shape_cast %17 : vector<4x256xf32> to vector<1x4x256xf32>
      tpu.vector_store %arg5[%c0_12, %c0_13, %c0_14], %20 {strides = array<i32>} : memref<1x4x256xf32, #tpu.memory_space<vmem>>, vector<1x4x256xf32>,
    } else {
    }
    %c256_i32 = arith.constant 256 : i32
    %3 = arith.muli %arg2, %c256_i32 : i32
    %4 = tpu.assume_multiple %3, 256 : i32
    %c0 = arith.constant 0 : index
    %c0_1 = arith.constant 0 : index
    %5 = arith.index_cast %4 : i32 to index
    %6 = vector.load %arg3[%c0, %c0_1, %5] : memref<1x4x256xbf16, #tpu.memory_space<vmem>>, vector<1x4x256xbf16>
    %7 = vector.shape_cast %6 : vector<1x4x256xbf16> to vector<4x256xbf16>
    %c0_2 = arith.constant 0 : index
    %c0_3 = arith.constant 0 : index
    %c0_4 = arith.constant 0 : index
    %8 = vector.load %arg5[%c0_2, %c0_3, %c0_4] : memref<1x4x256xf32, #tpu.memory_space<vmem>>, vector<1x4x256xf32>
    %9 = vector.shape_cast %8 : vector<1x4x256xf32> to vector<4x256xf32>
    %c0_5 = arith.constant 0 : index
    %c0_6 = arith.constant 0 : index
    %c0_7 = arith.constant 0 : index
    %10 = vector.load %arg4[%c0_5, %c0_6, %c0_7] : memref<1x256x256xbf16, #tpu.memory_space<vmem>>, vector<1x256x256xbf16>
    %11 = vector.shape_cast %10 : vector<1x256x256xbf16> to vector<256x256xbf16>
    %cst = arith.constant dense<0.000000e+00> : vector<4x256xf32>
    %12 = tpu.matmul %7, %11, %cst {dimension_numbers = #tpu.dot_dimension_numbers<[1], [0], [0], [1], [0, 0, 1, 1], [], []>} : vector<4x256xbf16>, vector<256x256xbf16>, vector<4x256xf32> -> vector<4x256xf32>
    %13 = arith.addf %9, %12 : vector<4x256xf32>
    %c0_8 = arith.constant 0 : index
    %c0_9 = arith.constant 0 : index
    %c0_10 = arith.constant 0 : index
    %14 = vector.load %arg5[%c0_8, %c0_9, %c0_10] : memref<1x4x256xf32, #tpu.memory_space<vmem>>, vector<1x4x256xf32>
    %15 = vector.shape_cast %14 : vector<1x4x256xf32> to vector<4x256xf32>
    %16 = vector.shape_cast %13 : vector<4x256xf32> to vector<1x4x256xf32>
    tpu.vector_store %arg5[%c0_8, %c0_9, %c0_10], %16 {strides = array<i32>} : memref<1x4x256xf32, #tpu.memory_space<vmem>>, vector<1x4x256xf32>,
    return
  }
  func.func @transform_0(%arg0: i32, %arg1: i32, %arg2: i32) -> (i32, i32, i32) {
    %c0_i32 = arith.constant 0 : i32
    %c0_i32_0 = arith.constant 0 : i32
    %c0_i32_1 = arith.constant 0 : i32
    return %arg0, %c0_i32, %c0_i32_0 : i32, i32, i32
  }
  func.func @transform_1(%arg0: i32, %arg1: i32, %arg2: i32) -> (i32, i32, i32) {
    %c0_i32 = arith.constant 0 : i32
    return %arg0, %arg2, %arg1 : i32, i32, i32
  }
  func.func @transform_2(%arg0: i32, %arg1: i32, %arg2: i32) -> (i32, i32, i32) {
    %c0_i32 = arith.constant 0 : i32
    %c0_i32_0 = arith.constant 0 : i32
    return %arg0, %c0_i32, %arg1 : i32, i32, i32
  }
}

</mosaic_0001>

<llo_original>
// kernel: tpu_custom_call.1
$region0: #{tpu_custom_call.1}
  #allocation0 [shape = 'u32[]', space=smem, size = 0x4, offset = 0x4, fixed_abs, tag = 'smem constant byte address 0x4 - core index']
  #allocation1 [shape = 'u32[144,128]{1,0:T(1,128)}', space=vmem, size = 0x12000, scoped, tag = 'internal scratch']
  %s0 = inlined_call_operand.hbm [shape: bf16[2,4,256], index: 0, kind: input, shape index: {}]
  %s1 = inlined_call_operand.hbm [shape: bf16[2,256,256], index: 1, kind: input, shape index: {}]
  %s2 = inlined_call_operand.hbm [shape: f32[2,4,256], index: 2, kind: output, shape index: {}]
  %s3 = sld [smem:[#allocation0]]
  $region53: #{tpu_custom_call.1} parent=0
    _
  %s5 = ssub.s32 1, %s3
  %s6 = scalar_select 0, %s5, %s3
  $region1: #{tpu_custom_call.1} parent=0
    #allocation2 [shape = 'u8[4096]{0}', space=vmem, size = 0x1000, scoped, tag = 'input window, operand 0']
    #allocation3 [shape = 's32[2]{0}', space=sflag, size = 0x8, scoped, tag = 'scoped memory for tpu_custom_call.1']
    #allocation4 [shape = 's32[2]{0}', space=sflag, size = 0x8, scoped, tag = 'scoped memory for tpu_custom_call.1']
    #allocation5 [shape = 'u8[262144]{0}', space=vmem, size = 0x40000, scoped, tag = 'input window, operand 1']
    #allocation6 [shape = 's32[2]{0}', space=sflag, size = 0x8, scoped, tag = 'scoped memory for tpu_custom_call.1']
    #allocation7 [shape = 'u8[8192]{0}', space=vmem, size = 0x2000, scoped, tag = 'output window, operand 0']
    %7 = vsyncpa [#allocation3], 0
    %s8 = scalar_lea.sflag [#allocation3], 1
    %9 = vsyncpa %s8, 0
    %10 = vsyncpa [#allocation6], 0
    %s11 = scalar_lea.sflag [#allocation6], 1
    %12 = vsyncpa %s11, 0
    %13 = vsyncpa [#allocation4], 0
    %s14 = scalar_lea.sflag [#allocation4], 1
    %15 = vsyncpa %s14, 0
    loop: start=0, step=1, limit=4
    $region2: #{tpu_custom_call.1} parent=1 // loop_pre_header
      _
    $region3: #{tpu_custom_call.1} parent=1 // loop_header
      %s17 = sphi 0, %s21
      %p18 = scmp.ge.s32.totalorder %s17, 4
      %s24 = sphi 0, %s43
      %s25 = sphi 0, %s39
      %s26 = sphi 0, %s35
      %s27 = sphi 0, %s24
      %s28 = sphi 0, %s25
      %s29 = sphi 0, %s26
      %s30 = sphi 0, %s27
      %s31 = sphi 0, %s28
      %s32 = sphi 0, %s29
      %s46 = sphi 0, %s48
      %s49 = sphi 0, %s46
      %s50 = sphi 0, %s49
      %s66 = sphi 0, %s50
      %s76 = sphi 0, %s78
      %s79 = sphi 0, %s76
      %s80 = sphi 0, %s79
      %s96 = sphi 0, %s80
      %s104 = sphi 0, %s106
      %s107 = sphi 0, %s104
      %s108 = sphi 0, %s107
      %s124 = sphi 0, %s108
    $region4: #{tpu_custom_call.1} parent=1 // loop_header_branch
      %20 = sbr.rel (%p18) target = $region8
    $region5: #{tpu_custom_call.1} parent=1 // loop_body
      %s22 = ssub.s32 %s17, 1
      %s23 = ssub.s32 %s17, 2
      %s33 = sadd.s32 1, %s26
      %p34 = scmp.ge.s32.totalorder %s33, 1
      %s35 = scalar_select %p34, 0, %s33
      %s36 = sadd.s32 1, %s25
      %s37 = scalar_select %p34, %s36, %s25
      %p38 = scmp.ge.s32.totalorder %s37, 1
      %s39 = scalar_select %p38, 0, %s37
      %s40 = sadd.s32 1, %s24
      %s41 = scalar_select %p38, %s40, %s24
      %p42 = scmp.ge.s32.totalorder %s41, 2
      %s43 = scalar_select %p42, 0, %s41
      %s44 = ssub.s32 %s24, %s43
      %p45 = scmp.eq.s32.totalorder %s44, 0
      %s47 = sadd.s32 %s46, 1
      %s48 = scalar_select %p45, %s46, %s47
      %p51 = pneg %p45
      %p52 = scmp.eq.s32.totalorder %s17, 1
      %p53 = por %p51, %p52
      %p54 = scmp.ne.s32.totalorder %s46, %s49
      %p55 = scmp.eq.s32.totalorder %s17, 0
      %p56 = por %p54, %p55
      %p57 = scmp.ne.s32.totalorder %s46, %s49
      %p58 = scmp.eq.s32.totalorder %s22, 1
      %p59 = por %p57, %p58
      %p60 = scmp.ne.s32.totalorder %s49, %s50
      %p61 = scmp.eq.s32.totalorder %s22, 0
      %p62 = por %p60, %p61
      %p63 = scmp.ne.s32.totalorder %s49, %s50
      %p64 = scmp.eq.s32.totalorder %s23, 1
      %p65 = por %p63, %p64
      %p67 = scmp.ne.s32.totalorder %s50, %s66
      %p68 = scmp.eq.s32.totalorder %s23, 0
      %p69 = por %p67, %p68
      %s70 = ssub.s32 %s24, %s43
      %s71 = ssub.s32 %s26, %s35
      %s72 = sor.u32 %s70, %s71
      %s73 = ssub.s32 %s25, %s39
      %s74 = sor.u32 %s72, %s73
      %p75 = scmp.eq.s32.totalorder %s74, 0
      %s77 = sadd.s32 %s76, 1
      %s78 = scalar_select %p75, %s76, %s77
      %p81 = pneg %p75
      %p82 = scmp.eq.s32.totalorder %s17, 1
      %p83 = por %p81, %p82
      %p84 = scmp.ne.s32.totalorder %s76, %s79
      %p85 = scmp.eq.s32.totalorder %s17, 0
      %p86 = por %p84, %p85
      %p87 = scmp.ne.s32.totalorder %s76, %s79
      %p88 = scmp.eq.s32.totalorder %s22, 1
      %p89 = por %p87, %p88
      %p90 = scmp.ne.s32.totalorder %s79, %s80
      %p91 = scmp.eq.s32.totalorder %s22, 0
      %p92 = por %p90, %p91
      %p93 = scmp.ne.s32.totalorder %s79, %s80
      %p94 = scmp.eq.s32.totalorder %s23, 1
      %p95 = por %p93, %p94
      %p97 = scmp.ne.s32.totalorder %s80, %s96
      %p98 = scmp.eq.s32.totalorder %s23, 0
      %p99 = por %p97, %p98
      %s100 = ssub.s32 %s24, %s43
      %s101 = ssub.s32 %s25, %s39
      %s102 = sor.u32 %s100, %s101
      %p103 = scmp.eq.s32.totalorder %s102, 0
      %s105 = sadd.s32 %s104, 1
      %s106 = scalar_select %p103, %s104, %s105
      %p109 = pneg %p103
      %p110 = scmp.eq.s32.totalorder %s17, 1
      %p111 = por %p109, %p110
      %p112 = scmp.ne.s32.totalorder %s104, %s107
      %p113 = scmp.eq.s32.totalorder %s17, 0
      %p114 = por %p112, %p113
      %p115 = scmp.ne.s32.totalorder %s104, %s107
      %p116 = scmp.eq.s32.totalorder %s22, 1
      %p117 = por %p115, %p116
      %p118 = scmp.ne.s32.totalorder %s107, %s108
      %p119 = scmp.eq.s32.totalorder %s22, 0
      %p120 = por %p118, %p119
      %p121 = scmp.ne.s32.totalorder %s107, %s108
      %p122 = scmp.eq.s32.totalorder %s23, 1
      %p123 = por %p121, %p122
      %p125 = scmp.ne.s32.totalorder %s108, %s124
      %p126 = scmp.eq.s32.totalorder %s23, 0
      %p127 = por %p125, %p126
      %p128 = scmp.le.s32.totalorder 1, %s17
      %p129 = scmp.lt.s32.totalorder %s17, 3
      %p130 = pnand %p128, %p129
      %p131 = pneg %p130
      // Predicated region
      $region9: #{tpu_custom_call.1} parent=5 // pred_check
        _
      $region10: #{tpu_custom_call.1} parent=5 // pred_check_branch
        %133 = sbr.rel (%p130) target = $region12
      $region11: #{tpu_custom_call.1} parent=5 // pred_region
        %s134 = ssub.s32 %s17, 1
      $region12: #{tpu_custom_call.1} parent=5 // pred_fallthru
        _
      %p135 = scmp.lt.s32.totalorder %s17, 2
      // Predicated region
      $region13: #{tpu_custom_call.1} parent=5 // pred_check
        %p136 = pneg %p135
      $region14: #{tpu_custom_call.1} parent=5 // pred_check_branch
        %138 = sbr.rel (%p136) target = $region16
      $region15: #{tpu_custom_call.1} parent=5 // pred_region
        // Predicated region
        $region17: #{tpu_custom_call.1} parent=15 // pred_check
          %p139 = pneg %p56
        $region18: #{tpu_custom_call.1} parent=15 // pred_check_branch
          %141 = sbr.rel (%p139) target = $region20
        $region19: #{tpu_custom_call.1} parent=15 // pred_region
          %s142 = sand.u32 %s46, 1
          %s143 = scalar_lea.sflag [#allocation3], %s142
          %s144 = sand.u32 %s46, 1
          %s145 = smul.addr %s144, 4
          %s146 = scalar_lea.vmem [#allocation2], %s145
          %s148 = ssub.s32 64, 64
          %149 = vsyncadd %s143, %s148
          %s150 = smul.addr %s24, 2
          %s151 = smul.addr %s150, 32
          %s152 = scalar_lea.hbm %s0, %s151
          %s154 = sshll.u32 %s146, 4
          %s155 = int_to_ptr.vmem [resolvable:$true] %s154
          %157 = dma.hbm_to_vmem [thread:$0]  %s152, 64, %s155, %s143
        $region20: #{tpu_custom_call.1} parent=15 // pred_fallthru
          _
        // Predicated region
        $region21: #{tpu_custom_call.1} parent=15 // pred_check
          %p158 = pneg %p86
        $region22: #{tpu_custom_call.1} parent=15 // pred_check_branch
          %160 = sbr.rel (%p158) target = $region24
        $region23: #{tpu_custom_call.1} parent=15 // pred_region
          %s161 = sand.u32 %s76, 1
          %s162 = scalar_lea.sflag [#allocation6], %s161
          %s163 = sand.u32 %s76, 1
          %s164 = smul.addr %s163, 256
          %s165 = scalar_lea.vmem [#allocation5], %s164
          %s166 = smul.u32 32, %s26
          %s167 = smul.u32 2, %s25
          %s169 = ssub.s32 4096, 4096
          %170 = vsyncadd %s162, %s169
          %s171 = smul.addr %s166, 2
          %s172 = sadd.s32 %s167, %s171
          %s173 = smul.addr %s24, 64
          %s174 = sadd.s32 %s172, %s173
          %s175 = smul.addr %s174, 64
          %s176 = scalar_lea.hbm %s1, %s175
          %s177 = sshll.u32 %s165, 4
          %s178 = int_to_ptr.vmem [resolvable:$true] %s177
          %183 = dma.hbm_to_vmem [thread:$0]  %s176, 4096, %s178, %s162, 128, 128, 8
        $region24: #{tpu_custom_call.1} parent=15 // pred_fallthru
          _
      $region16: #{tpu_custom_call.1} parent=5 // pred_fallthru
        _
      %p184 = scmp.le.s32.totalorder 1, %s17
      %p185 = scmp.lt.s32.totalorder %s17, 3
      %p186 = pnand %p184, %p185
      %p187 = pneg %p186
      // Predicated region
      $region25: #{tpu_custom_call.1} parent=5 // pred_check
        _
      $region26: #{tpu_custom_call.1} parent=5 // pred_check_branch
        %189 = sbr.rel (%p186) target = $region28
      $region27: #{tpu_custom_call.1} parent=5 // pred_region
        %s190 = ssub.s32 %s17, 1
        %s191 = sand.u32 %s49, 1
        %s192 = scalar_lea.sflag [#allocation3], %s191
        %s193 = sand.u32 %s49, 1
        %s194 = smul.addr %s193, 4
        %s195 = scalar_lea.vmem [#allocation2], %s194
        // Predicated region
        $region29: #{tpu_custom_call.1} parent=27 // pred_check
          %p196 = pneg %p62
        $region30: #{tpu_custom_call.1} parent=27 // pred_check_branch
          %198 = sbr.rel (%p196) target = $region32
        $region31: #{tpu_custom_call.1} parent=27 // pred_region
          %199 = dma.done %s192, 64
        $region32: #{tpu_custom_call.1} parent=27 // pred_fallthru
          _
        %s200 = sand.u32 %s79, 1
        %s201 = scalar_lea.sflag [#allocation6], %s200
        %s202 = sand.u32 %s79, 1
        %s203 = smul.addr %s202, 256
        %s204 = scalar_lea.vmem [#allocation5], %s203
        // Predicated region
        $region33: #{tpu_custom_call.1} parent=27 // pred_check
          %p205 = pneg %p92
        $region34: #{tpu_custom_call.1} parent=27 // pred_check_branch
          %207 = sbr.rel (%p205) target = $region36
        $region35: #{tpu_custom_call.1} parent=27 // pred_region
          %208 = dma.done %s201, 4096
        $region36: #{tpu_custom_call.1} parent=27 // pred_fallthru
          _
        %s209 = sand.u32 %s49, 1
        %s210 = scalar_lea.sflag [#allocation3], %s209
        %s211 = sand.u32 %s49, 1
        %s212 = smul.addr %s211, 4
        %s213 = scalar_lea.vmem [#allocation2], %s212
        %p214 = pneg %p62
        %p215 = pneg %p59
        %s216 = sand.u32 %s79, 1
        %s217 = scalar_lea.sflag [#allocation6], %s216
        %s218 = sand.u32 %s79, 1
        %s219 = smul.addr %s218, 256
        %s220 = scalar_lea.vmem [#allocation5], %s219
        %p221 = pneg %p92
        %p222 = pneg %p89
        %p223 = pneg %p120
        %p224 = pneg %p117
        %s225 = sand.u32 %s107, 1
        %s226 = scalar_lea.sflag [#allocation4], %s225
        %s227 = sand.u32 %s107, 1
        %s228 = smul.addr %s227, 8
        %s229 = scalar_lea.vmem [#allocation7], %s228
        %s230 = smul.u32 32, %s29
        %s231 = smul.u32 2, %s28
        %s232 = smul.u32 2, %s28
        %p233 = scmp.eq.s32.totalorder %s29, 0
        // Predicated region
        $region37: #{tpu_custom_call.1} parent=27 // pred_check
          %p234 = pneg %p233
        $region38: #{tpu_custom_call.1} parent=27 // pred_check_branch
          %236 = sbr.rel (%p234) target = $region40
        $region39: #{tpu_custom_call.1} parent=27 // pred_region
          %237 = vst [vmem:[%s229] sm:$0xff] 0.0
        $region40: #{tpu_custom_call.1} parent=27 // pred_fallthru
          _
        %s238 = smul.u32 %s29, 256
        %s239 = sshra.s32 %s238, 7
        %s240 = sand.u32 %s238, 127
        %s241 = smul.addr %s239, 2
        %s242 = scalar_lea.vmem %s195, %s241 [#allocation2]
        %v243 = vld [vmem:[%s242] sm:$0xf]
        %v244 = vld [vmem:[%s229] sm:$0xff]
        %v245 = vld [vmem:[%s204] sm:$0xff]
        %v246 = vld [vmem:[%s204 + $0x8] sm:$0xff]
        %v247 = vld [vmem:[%s204 + $0x10] sm:$0xff]
        %v248 = vld [vmem:[%s204 + $0x18] sm:$0xff]
        %v249 = vld [vmem:[%s204 + $0x20] sm:$0xff]
        %v250 = vld [vmem:[%s204 + $0x28] sm:$0xff]
        %v251 = vld [vmem:[%s204 + $0x30] sm:$0xff]
        %v252 = vld [vmem:[%s204 + $0x38] sm:$0xff]
        %v253 = vld [vmem:[%s204 + $0x40] sm:$0xff]
        %v254 = vld [vmem:[%s204 + $0x48] sm:$0xff]
        %v255 = vld [vmem:[%s204 + $0x50] sm:$0xff]
        %v256 = vld [vmem:[%s204 + $0x58] sm:$0xff]
        %v257 = vld [vmem:[%s204 + $0x60] sm:$0xff]
        %v258 = vld [vmem:[%s204 + $0x68] sm:$0xff]
        %v259 = vld [vmem:[%s204 + $0x70] sm:$0xff]
        %v260 = vld [vmem:[%s204 + $0x78] sm:$0xff]
        %v261 = vld [vmem:[%s204 + $0x80] sm:$0xff]
        %v262 = vld [vmem:[%s204 + $0x88] sm:$0xff]
        %v263 = vld [vmem:[%s204 + $0x90] sm:$0xff]
        %v264 = vld [vmem:[%s204 + $0x98] sm:$0xff]
        %v265 = vld [vmem:[%s204 + $0xa0] sm:$0xff]
        %v266 = vld [vmem:[%s204 + $0xa8] sm:$0xff]
        %v267 = vld [vmem:[%s204 + $0xb0] sm:$0xff]
        %v268 = vld [vmem:[%s204 + $0xb8] sm:$0xff]
        %v269 = vld [vmem:[%s204 + $0xc0] sm:$0xff]
        %v270 = vld [vmem:[%s204 + $0xc8] sm:$0xff]
        %v271 = vld [vmem:[%s204 + $0xd0] sm:$0xff]
        %v272 = vld [vmem:[%s204 + $0xd8] sm:$0xff]
        %v273 = vld [vmem:[%s204 + $0xe0] sm:$0xff]
        %v274 = vld [vmem:[%s204 + $0xe8] sm:$0xff]
        %v275 = vld [vmem:[%s204 + $0xf0] sm:$0xff]
        %v276 = vld [vmem:[%s204 + $0xf8] sm:$0xff]
        %v279 = vunpack.c.l.s4 1983009808
        %v280 = vunpack.c.0.s8 %v279
        %v281 = vlaneseq
        %v282 = vshrl.u32 %v281, 7
        %v283 = vsub.s32 %v280, %v282
        %v284 = vrot.slane %v243, %v283
        %v285 = vcombine.high %v284, %v284
        %v320 = vunpack.c.l.b16 %v245
        %v321 = vunpack.c.h.b16 %v245
        %v322 = vunpack.c.l.b16 %v246
        %v323 = vunpack.c.h.b16 %v246
        %v324 = vunpack.c.l.b16 %v247
        %v325 = vunpack.c.h.b16 %v247
        %v326 = vunpack.c.l.b16 %v248
        %v327 = vunpack.c.h.b16 %v248
        %v328 = vunpack.c.l.b16 %v249
        %v329 = vunpack.c.h.b16 %v249
        %v330 = vunpack.c.l.b16 %v250
        %v331 = vunpack.c.h.b16 %v250
        %v332 = vunpack.c.l.b16 %v251
        %v333 = vunpack.c.h.b16 %v251
        %v334 = vunpack.c.l.b16 %v252
        %v335 = vunpack.c.h.b16 %v252
        %v336 = vunpack.c.l.b16 %v253
        %v337 = vunpack.c.h.b16 %v253
        %v338 = vunpack.c.l.b16 %v254
        %v339 = vunpack.c.h.b16 %v254
        %v340 = vunpack.c.l.b16 %v255
        %v341 = vunpack.c.h.b16 %v255
        %v342 = vunpack.c.l.b16 %v256
        %v343 = vunpack.c.h.b16 %v256
        %v344 = vunpack.c.l.b16 %v257
        %v345 = vunpack.c.h.b16 %v257
        %v346 = vunpack.c.l.b16 %v258
        %v347 = vunpack.c.h.b16 %v258
        %v348 = vunpack.c.l.b16 %v259
        %v349 = vunpack.c.h.b16 %v259
        %v350 = vunpack.c.l.b16 %v260
        %v351 = vunpack.c.h.b16 %v260
        %v352 = vunpack.c.l.b16 %v261
        %v353 = vunpack.c.h.b16 %v261
        %v354 = vunpack.c.l.b16 %v262
        %v355 = vunpack.c.h.b16 %v262
        %v356 = vunpack.c.l.b16 %v263
        %v357 = vunpack.c.h.b16 %v263
        %v358 = vunpack.c.l.b16 %v264
        %v359 = vunpack.c.h.b16 %v264
        %v360 = vunpack.c.l.b16 %v265
        %v361 = vunpack.c.h.b16 %v265
        %v362 = vunpack.c.l.b16 %v266
        %v363 = vunpack.c.h.b16 %v266
        %v364 = vunpack.c.l.b16 %v267
        %v365 = vunpack.c.h.b16 %v267
        %v366 = vunpack.c.l.b16 %v268
        %v367 = vunpack.c.h.b16 %v268
        %v368 = vunpack.c.l.b16 %v269
        %v369 = vunpack.c.h.b16 %v269
        %v370 = vunpack.c.l.b16 %v270
        %v371 = vunpack.c.h.b16 %v270
        %v372 = vunpack.c.l.b16 %v271
        %v373 = vunpack.c.h.b16 %v271
        %v374 = vunpack.c.l.b16 %v272
        %v375 = vunpack.c.h.b16 %v272
        %v376 = vunpack.c.l.b16 %v273
        %v377 = vunpack.c.h.b16 %v273
        %v378 = vunpack.c.l.b16 %v274
        %v379 = vunpack.c.h.b16 %v274
        %v380 = vunpack.c.l.b16 %v275
        %v381 = vunpack.c.h.b16 %v275
        %v382 = vunpack.c.l.b16 %v276
        %v383 = vunpack.c.h.b16 %v276
        %v384 = vpack.c.b16 %v322, %v320
        %v385 = vpack.c.b16 %v323, %v321
        %v386 = vpack.c.b16 %v326, %v324
        %v387 = vpack.c.b16 %v327, %v325
        %v388 = vpack.c.b16 %v330, %v328
        %v389 = vpack.c.b16 %v331, %v329
        %v390 = vpack.c.b16 %v334, %v332
        %v391 = vpack.c.b16 %v335, %v333
        %v392 = vpack.c.b16 %v338, %v336
        %v393 = vpack.c.b16 %v339, %v337
        %v394 = vpack.c.b16 %v342, %v340
        %v395 = vpack.c.b16 %v343, %v341
        %v396 = vpack.c.b16 %v346, %v344
        %v397 = vpack.c.b16 %v347, %v345
        %v398 = vpack.c.b16 %v350, %v348
        %v399 = vpack.c.b16 %v351, %v349
        %v400 = vpack.c.b16 %v354, %v352
        %v401 = vpack.c.b16 %v355, %v353
        %v402 = vpack.c.b16 %v358, %v356
        %v403 = vpack.c.b16 %v359, %v357
        %v404 = vpack.c.b16 %v362, %v360
        %v405 = vpack.c.b16 %v363, %v361
        %v406 = vpack.c.b16 %v366, %v364
        %v407 = vpack.c.b16 %v367, %v365
        %v408 = vpack.c.b16 %v370, %v368
        %v409 = vpack.c.b16 %v371, %v369
        %v410 = vpack.c.b16 %v374, %v372
        %v411 = vpack.c.b16 %v375, %v373
        %v412 = vpack.c.b16 %v378, %v376
        %v413 = vpack.c.b16 %v379, %v377
        %v414 = vpack.c.b16 %v382, %v380
        %v415 = vpack.c.b16 %v383, %v381
        %448 = vmatprep.subr.bf16.mxu0 %v385
        %449 = vmatpush1.bf16.msra.mxu0 %v384
        %450 = vmatprep.subr.bf16.mxu0 %v387
        %451 = vmatpush1.bf16.msra.mxu0 %v386
        %452 = vmatprep.subr.bf16.mxu0 %v389
        %453 = vmatpush1.bf16.msra.mxu0 %v388
        %454 = vmatprep.subr.bf16.mxu0 %v391
        %455 = vmatpush1.bf16.msra.mxu0 %v390
        %456 = vmatprep.subr.bf16.mxu0 %v393
        %457 = vmatpush1.bf16.msra.mxu0 %v392
        %458 = vmatprep.subr.bf16.mxu0 %v395
        %459 = vmatpush1.bf16.msra.mxu0 %v394
        %460 = vmatprep.subr.bf16.mxu0 %v397
        %461 = vmatpush1.bf16.msra.mxu0 %v396
        %462 = vmatprep.subr.bf16.mxu0 %v399
        %463 = vmatpush1.bf16.msra.mxu0 %v398
        %464 = vmatprep.subr.bf16.mxu0 %v401
        %465 = vmatpush1.bf16.msra.mxu0 %v400
        %466 = vmatprep.subr.bf16.mxu0 %v403
        %467 = vmatpush1.bf16.msra.mxu0 %v402
        %468 = vmatprep.subr.bf16.mxu0 %v405
        %469 = vmatpush1.bf16.msra.mxu0 %v404
        %470 = vmatprep.subr.bf16.mxu0 %v407
        %471 = vmatpush1.bf16.msra.mxu0 %v406
        %472 = vmatprep.subr.bf16.mxu0 %v409
        %473 = vmatpush1.bf16.msra.mxu0 %v408
        %474 = vmatprep.subr.bf16.mxu0 %v411
        %475 = vmatpush1.bf16.msra.mxu0 %v410
        %476 = vmatprep.subr.bf16.mxu0 %v413
        %477 = vmatpush1.bf16.msra.mxu0 %v412
        %478 = vmatprep.subr.bf16.mxu0 %v415
        %479 = vmatpush1.bf16.msra.mxu0 %v414
        %480 = vmatprep.mubr.bf16.mxu0 %v285
        %481 = vmatmul.mubr.bf16.gmra.mrb[0].mxu0 %v284
        %v482 = vpop.f32.mrb[0].mxu0
        %v483 = vadd.f32 0.0, %v482
        %v484 = vpop.f32.mrb[0].mxu0
        %v485 = vadd.f32 0.0, %v484
        %v486 = vpop.f32.mrb[0].mxu0
        %v487 = vpop.f32.mrb[0].mxu0
        %488 = vdwg.mxu0
        %v491 = vcombine.low %v483, %v485
        %v493 = vadd.f32 %v244, %v491
        %494 = vst [vmem:[%s229] sm:$0xff] %v493
        %s495 = sand.u32 %s107, 1
        %s496 = scalar_lea.sflag [#allocation4], %s495
        %s497 = sand.u32 %s107, 1
        %s498 = smul.addr %s497, 8
        %s499 = scalar_lea.vmem [#allocation7], %s498
        // Predicated region
        $region41: #{tpu_custom_call.1} parent=27 // pred_check
          %p500 = pneg %p117
        $region42: #{tpu_custom_call.1} parent=27 // pred_check_branch
          %502 = sbr.rel (%p500) target = $region44
        $region43: #{tpu_custom_call.1} parent=27 // pred_region
          %s503 = smul.u32 2, %s28
          %s505 = ssub.s32 128, 128
          %506 = vsyncadd %s496, %s505
          %s507 = smul.addr %s27, 2
          %s508 = sadd.s32 %s503, %s507
          %s509 = smul.addr %s508, 64
          %s510 = scalar_lea.hbm %s2, %s509
          %s512 = sshll.u32 %s499, 4
          %s513 = int_to_ptr.vmem [resolvable:$true] %s512
          %515 = dma.vmem_to_hbm [thread:$0]  %s513, 128, %s510, %s496
        $region44: #{tpu_custom_call.1} parent=27 // pred_fallthru
          _
      $region28: #{tpu_custom_call.1} parent=5 // pred_fallthru
        _
      %p516 = scmp.le.s32.totalorder 2, %s17
      // Predicated region
      $region45: #{tpu_custom_call.1} parent=5 // pred_check
        %p517 = pneg %p516
      $region46: #{tpu_custom_call.1} parent=5 // pred_check_branch
        %519 = sbr.rel (%p517) target = $region48
      $region47: #{tpu_custom_call.1} parent=5 // pred_region
        %s520 = ssub.s32 %s17, 2
        // Predicated region
        $region49: #{tpu_custom_call.1} parent=47 // pred_check
          %p521 = pneg %p123
        $region50: #{tpu_custom_call.1} parent=47 // pred_check_branch
          %523 = sbr.rel (%p521) target = $region52
        $region51: #{tpu_custom_call.1} parent=47 // pred_region
          %s524 = sand.u32 %s108, 1
          %s525 = scalar_lea.sflag [#allocation4], %s524
          %s526 = sand.u32 %s108, 1
          %s527 = smul.addr %s526, 8
          %s528 = scalar_lea.vmem [#allocation7], %s527
          %529 = dma.done %s525, 128
        $region52: #{tpu_custom_call.1} parent=47 // pred_fallthru
          _
      $region48: #{tpu_custom_call.1} parent=5 // pred_fallthru
        _
    $region6: #{tpu_custom_call.1} parent=1 // loop_footer
      %s21 = sadd.s32 1, %s17
    $region7: #{tpu_custom_call.1} parent=1 // loop_footer_branch
      %16 = sbr.rel target = $region3
    $region8: #{tpu_custom_call.1} parent=1 // loop_exit
      _
    %530 = vsyncpa [#allocation3], 1
    %s531 = scalar_lea.sflag [#allocation3], 1
    %532 = vsyncpa %s531, 1
    %533 = vsyncpa [#allocation6], 1
    %s534 = scalar_lea.sflag [#allocation6], 1
    %535 = vsyncpa %s534, 1
    %536 = vsyncpa [#allocation4], 1
    %s537 = scalar_lea.sflag [#allocation4], 1
    %538 = vsyncpa %s537, 1

</llo_original>
